<compile_context>
chip_gen: v5e
topology: v5e:2x2
jax: 0.10.0
libtpu: 0.0.40
codegen_flags: <defaults>
</compile_context>

<pallas_src>
import functools
import math

import jax
import jax.numpy as jnp
from jax.experimental import pallas as pl
from jax.experimental.pallas import tpu as pltpu


_VMEM_LIMIT_BYTES = 32 * 1024 * 1024  # safe on v5e/v6e (128 MiB phys) and v7x (64 MiB phys)
_Z_TILE_BUDGET_BYTES = 4 * 1024 * 1024  # one streamed z tile (x2 when double-buffered)


def _round_up(x, m):
    return (x + m - 1) // m * m


def _pick_tiles(N, M, d_in, itemsize):
    """Pick (tile_n, chunk_n): big tiles to amortize ~0.35us/step overhead, bounded by VMEM."""
    chunk_n = 128 if N >= 128 else _round_up(max(N, 1), 8)
    per_vertex = max(M * d_in * itemsize, 1)
    cap = max(chunk_n, (_Z_TILE_BUDGET_BYTES // per_vertex) // chunk_n * chunk_n)
    tile_n = min(1024, cap, _round_up(N, chunk_n))
    tile_n = max(chunk_n, (tile_n // chunk_n) * chunk_n)
    return tile_n, chunk_n


# --------------------- Kernel 1: per-tile partial sums of tanh(z @ W1 + b1) ---------------------
def _partial_sum_kernel(z_ref, w1_ref, b1_ref, psum_ref, *, n_total, chunk_n, ragged):
    tn, M, d = z_ref.shape
    H = w1_ref.shape[1]
    base = pl.program_id(0) * tn

    w1 = w1_ref[...].astype(jnp.bfloat16)           # hoisted out of the chunk loop
    b1 = b1_ref[...]                                # (1, H) f32
    n_chunks = tn // chunk_n

    def body(c, acc):
        r0 = pl.multiple_of(c * chunk_n, chunk_n)
        zc = z_ref[pl.ds(r0, chunk_n), :, :]                                # (chunk_n, M, d)
        zf = zc.reshape(chunk_n * M, d).astype(jnp.bfloat16)                # layout-preserving
        h = jnp.dot(zf, w1, preferred_element_type=jnp.float32)             # MXU, bf16 in / f32 acc
        h = jnp.tanh(h + b1).reshape(chunk_n, M, H)
        if ragged:  # mask rows past N in the last tile (jnp.where also kills NaN/garbage rows)
            rid = jax.lax.broadcasted_iota(jnp.int32, (chunk_n, M, H), 0)
            h = jnp.where(base + r0 + rid < n_total, h, 0.0)
        return acc + jnp.sum(h, axis=0)                                      # (M, H), VPU adds

    acc = jax.lax.fori_loop(0, n_chunks, body, jnp.zeros((M, H), jnp.float32))
    psum_ref[...] = acc.reshape(1, M, H)


# --------------------- Kernel 2 (tiny): partial sums -> mean -> fc2 -> softmax ------------------
def _beta_kernel(psum_ref, w2_ref, beta_ref, *, n_total):
    s_mean = jnp.sum(psum_ref[...], axis=0) * jnp.float32(1.0 / n_total)     # (M, H)
    e = jnp.dot(s_mean, w2_ref[...], preferred_element_type=jnp.float32)     # (M, 1)
    e = e - jnp.max(e, axis=0, keepdims=True)                                # stable softmax
    p = jnp.exp(e)
    beta_ref[...] = (p / jnp.sum(p, axis=0, keepdims=True)).astype(beta_ref.dtype)


# --------------------- Kernel 3: out[n, :] = sum_m beta[m] * z[n, m, :] --------------------------
def _agg_kernel(beta_ref, z_ref, o_ref):
    tn, M, d = z_ref.shape
    acc = beta_ref[0, 0] * z_ref[:, 0, :]            # scalar (SMEM) * lane-dense (tn, d) slab
    for m in range(1, M):                            # unrolled VPU FMAs over metapaths
        acc = acc + beta_ref[m, 0] * z_ref[:, m, :]
    o_ref[...] = acc.astype(o_ref.dtype)


def inter_metapath_aggregation(z, w1, b1, w2, *, tile_n=None):
    """z: (N, M, d_in), w1: (d_in, H) (=fc1.weight.T), b1: (H,), w2: (H, 1) -> (N, d_in)."""
    N, M, d_in = z.shape
    H = w1.shape[1]

    if tile_n is None:
        tile_n, chunk_n = _pick_tiles(N, M, d_in, jnp.dtype(z.dtype).itemsize)
    else:
        assert tile_n % 8 == 0, "tile_n must be a multiple of 8"
        chunk_n = math.gcd(tile_n, 128)

    n_tiles = pl.cdiv(N, tile_n)
    ragged = (N % tile_n) != 0
    b1_2d = b1.reshape(1, H)

    # ---- pass 1: per-tile partial sums (parallel over tiles / TensorCores) ----
    psum = pl.pallas_call(
        functools.partial(_partial_sum_kernel, n_total=N, chunk_n=chunk_n, ragged=ragged),
        out_shape=jax.ShapeDtypeStruct((n_tiles, M, H), jnp.float32),
        grid=(n_tiles,),
        in_specs=[
            pl.BlockSpec((tile_n, M, d_in), lambda i: (i, 0, 0)),
            pl.BlockSpec((d_in, H), lambda i: (0, 0)),
            pl.BlockSpec((1, H), lambda i: (0, 0)),
        ],
        out_specs=pl.BlockSpec((1, M, H), lambda i: (i, 0, 0)),
        compiler_params=pltpu.CompilerParams(
            dimension_semantics=("parallel",),
            vmem_limit_bytes=_VMEM_LIMIT_BYTES),
        cost_estimate=pl.CostEstimate(
            flops=2 * N * M * d_in * H,
            transcendentals=N * M * H,
            bytes_accessed=N * M * d_in * z.dtype.itemsize + d_in * H * 4 + H * 4
                           + n_tiles * M * H * 4),
    )(z, w1, b1_2d)

    # ---- pass 2 (tiny): combine partial sums, apply fc2 and softmax -> beta (M, 1) ----
    beta = pl.pallas_call(
        functools.partial(_beta_kernel, n_total=N),
        out_shape=jax.ShapeDtypeStruct((M, 1), jnp.float32),
        grid=(1,),
        in_specs=[
            pl.BlockSpec((n_tiles, M, H), lambda i: (0, 0, 0)),
            pl.BlockSpec((H, 1), lambda i: (0, 0)),
        ],
        out_specs=pl.BlockSpec((M, 1), lambda i: (0, 0)),
        compiler_params=pltpu.CompilerParams(dimension_semantics=("arbitrary",)),
    )(psum, w2)

    # ---- pass 3: weighted sum over metapaths (beta read as scalars from SMEM) ----
    out = pl.pallas_call(
        _agg_kernel,
        out_shape=jax.ShapeDtypeStruct((N, d_in), z.dtype),
        grid=(n_tiles,),
        in_specs=[
            pl.BlockSpec((M, 1), lambda i: (0, 0), memory_space=pltpu.MemorySpace.SMEM),
            pl.BlockSpec((tile_n, M, d_in), lambda i: (i, 0, 0)),
        ],
        out_specs=pl.BlockSpec((tile_n, d_in), lambda i: (i, 0)),
        compiler_params=pltpu.CompilerParams(
            dimension_semantics=("parallel",),
            vmem_limit_bytes=_VMEM_LIMIT_BYTES),
        cost_estimate=pl.CostEstimate(
            flops=2 * N * M * d_in,
            transcendentals=0,
            bytes_accessed=N * M * d_in * z.dtype.itemsize + N * d_in * z.dtype.itemsize + M * 4),
    )(beta, z)

    return out


def _reference(z, w1, b1, w2):
    s = jnp.tanh(z @ w1 + b1).mean(axis=0)        # (M, H)
    e = s @ w2                                    # (M, 1)
    beta = jax.nn.softmax(e, axis=0)              # (M, 1)
    beta = beta.reshape(1, -1, 1)
    return (beta * z).sum(axis=1)                 # (N, d_in)


if __name__ == "__main__":
    key = jax.random.PRNGKey(0)
    kz, kw1, kb1, kw2, kz2 = jax.random.split(key, 5)

    # Shapes implied by the module: z (N vertices, M metapaths, d_in embedding).
    N, M, d_in, H = 256, 8, 128, 128
    z = jax.random.normal(kz, (N, M, d_in), dtype=jnp.float32)
    # nn.Linear shapes: fc1 (H, d_in)+(H,), fc2 (1, H) no bias — stored transposed here.
    w1 = jax.random.normal(kw1, (d_in, H), dtype=jnp.float32) * 0.05   # fc1.weight.T
    b1 = jax.random.normal(kb1, (H,), dtype=jnp.float32) * 0.05        # fc1.bias
    w2 = jax.random.normal(kw2, (H, 1), dtype=jnp.float32) * 0.05      # fc2.weight.T

    # Test 1: aligned N, auto tile selection.
    out = jax.block_until_ready(inter_metapath_aggregation(z, w1, b1, w2))
    ref = _reference(z, w1, b1, w2)
    assert out.shape == (N, d_in)
    # bf16 MXU inputs (f32 accumulation) => slightly looser tolerance than pure f32.
    assert jnp.allclose(out, ref, atol=5e-3, rtol=5e-3), "mismatch vs JAX reference (test 1)"

    # Test 2: ragged N with a forced small tile — exercises the masked last tile.
    N2 = 200
    z2 = jax.random.normal(kz2, (N2, M, d_in), dtype=jnp.float32)
    out2 = jax.block_until_ready(inter_metapath_aggregation(z2, w1, b1, w2, tile_n=64))
    ref2 = _reference(z2, w1, b1, w2)
    assert out2.shape == (N2, d_in)
    assert jnp.allclose(out2, ref2, atol=5e-3, rtol=5e-3), "mismatch vs JAX reference (test 2)"

    print("KERNEL_OK")
</pallas_src>

<mosaic_0001>
module attributes {stable_mosaic.version = 11 : i64} {
  func.func @_partial_sum_kernel(%arg0: i32, %arg1: memref<256x8x128xf32, #tpu.memory_space<vmem>>, %arg2: memref<128x128xf32, #tpu.memory_space<vmem>>, %arg3: memref<1x128xf32, #tpu.memory_space<vmem>>, %arg4: memref<1x8x128xf32, #tpu.memory_space<vmem>>) attributes {dimension_semantics = [#tpu.dimension_semantics<parallel>], iteration_bounds = array<i64: 1>, scalar_prefetch = 0 : i64, scratch_operands = 0 : i64, tpu.core_type = #tpu.core_type<tc>, window_params = [{transform_indices = @transform_0, window_bounds = array<i64: 256, 8, 128>}, {pipeline_mode = #tpu.pipeline_mode<synchronous>, transform_indices = @transform_1, window_bounds = array<i64: 128, 128>}, {pipeline_mode = #tpu.pipeline_mode<synchronous>, transform_indices = @transform_2, window_bounds = array<i64: 1, 128>}, {transform_indices = @transform_3, window_bounds = array<i64: 1, 8, 128>}]} {
    %c0 = arith.constant 0 : index
    %c0_0 = arith.constant 0 : index
    %0 = vector.load %arg2[%c0, %c0_0] : memref<128x128xf32, #tpu.memory_space<vmem>>, vector<128x128xf32>
    %1 = arith.truncf %0 : vector<128x128xf32> to vector<128x128xbf16>
    %c0_1 = arith.constant 0 : index
    %c0_2 = arith.constant 0 : index
    %2 = vector.load %arg3[%c0_1, %c0_2] : memref<1x128xf32, #tpu.memory_space<vmem>>, vector<1x128xf32>
    %cst = arith.constant 0.000000e+00 : f32
    %3 = vector.broadcast %cst : f32 to vector<8x128xf32>
    %c0_i32 = arith.constant 0 : i32
    %c2_i32 = arith.constant 2 : i32
    %4 = arith.addi %c0_i32, %c2_i32 : i32
    %c1_i32 = arith.constant 1 : i32
    %5 = scf.for %arg5 = %c0_i32 to %4 step %c1_i32 iter_args(%arg6 = %3) -> (vector<8x128xf32>)  : i32 {
      %c128_i32 = arith.constant 128 : i32
      %8 = arith.muli %arg5, %c128_i32 : i32
      %9 = tpu.assume_multiple %8, 128 : i32
      %10 = arith.index_cast %9 : i32 to index
      %c0_7 = arith.constant 0 : index
      %c0_8 = arith.constant 0 : index
      %11 = vector.load %arg1[%10, %c0_7, %c0_8] : memref<256x8x128xf32, #tpu.memory_space<vmem>>, vector<128x8x128xf32>
      %12 = vector.shape_cast %11 : vector<128x8x128xf32> to vector<1024x128xf32>
      %13 = arith.truncf %12 : vector<1024x128xf32> to vector<1024x128xbf16>
      %cst_9 = arith.constant dense<0.000000e+00> : vector<1024x128xf32>
      %14 = tpu.matmul %13, %1, %cst_9 {dimension_numbers = #tpu.dot_dimension_numbers<[1], [0], [0], [1], [0, 0, 1, 1], [], []>} : vector<1024x128xbf16>, vector<128x128xbf16>, vector<1024x128xf32> -> vector<1024x128xf32>
      %15 = vector.broadcast %2 : vector<1x128xf32> to vector<1024x128xf32>
      %16 = arith.addf %14, %15 : vector<1024x128xf32>
      %17 = math.tanh %16 : vector<1024x128xf32>
      %18 = vector.shape_cast %17 : vector<1024x128xf32> to vector<128x8x128xf32>
      %cst_10 = arith.constant dense<0.000000e+00> : vector<8x128xf32>
      %19 = vector.multi_reduction <add>, %18, %cst_10 [0] : vector<128x8x128xf32> to vector<8x128xf32>
      %20 = arith.addf %arg6, %19 : vector<8x128xf32>
      scf.yield %20 : vector<8x128xf32>
    }
    %c2_i32_3 = arith.constant 2 : i32
    %6 = vector.shape_cast %5 : vector<8x128xf32> to vector<1x8x128xf32>
    %c0_4 = arith.constant 0 : index
    %c0_5 = arith.constant 0 : index
    %c0_6 = arith.constant 0 : index
    %7 = vector.load %arg4[%c0_4, %c0_5, %c0_6] : memref<1x8x128xf32, #tpu.memory_space<vmem>>, vector<1x8x128xf32>
    tpu.vector_store %arg4[%c0_4, %c0_5, %c0_6], %6 {strides = array<i32>} : memref<1x8x128xf32, #tpu.memory_space<vmem>>, vector<1x8x128xf32>,
    return
  }
  func.func @transform_0(%arg0: i32) -> (i32, i32, i32) {
    %c0_i32 = arith.constant 0 : i32
    %c0_i32_0 = arith.constant 0 : i32
    %c0_i32_1 = arith.constant 0 : i32
    return %arg0, %c0_i32, %c0_i32_0 : i32, i32, i32
  }
  func.func @transform_1(%arg0: i32) -> (i32, i32) {
    %c0_i32 = arith.constant 0 : i32
    %c0_i32_0 = arith.constant 0 : i32
    %c0_i32_1 = arith.constant 0 : i32
    return %c0_i32, %c0_i32_0 : i32, i32
  }
  func.func @transform_2(%arg0: i32) -> (i32, i32) {
    %c0_i32 = arith.constant 0 : i32
    %c0_i32_0 = arith.constant 0 : i32
    %c0_i32_1 = arith.constant 0 : i32
    return %c0_i32, %c0_i32_0 : i32, i32
  }
  func.func @transform_3(%arg0: i32) -> (i32, i32, i32) {
    %c0_i32 = arith.constant 0 : i32
    %c0_i32_0 = arith.constant 0 : i32
    %c0_i32_1 = arith.constant 0 : i32
    return %arg0, %c0_i32, %c0_i32_0 : i32, i32, i32
  }
}

</mosaic_0001>

<llo_original>
// kernel: tpu_custom_call.1
$region0: #{tpu_custom_call.1}
  #allocation0 [shape = 'u32[]', space=smem, size = 0x4, offset = 0x4, fixed_abs, tag = 'smem constant byte address 0x4 - core index']
  #allocation1 [shape = 'u32[72,128]{1,0:T(1,128)}', space=vmem, size = 0x9000, scoped, tag = 'internal scratch']
  %s0 = inlined_call_operand.hbm [shape: f32[256,8,128], index: 0, kind: input, shape index: {}]
  %s1 = inlined_call_operand.hbm [shape: f32[128,128], index: 1, kind: input, shape index: {}]
  %s2 = inlined_call_operand.vmem [shape: f32[1,128], index: 2, kind: input, shape index: {}]
  %s3 = inlined_call_operand.hbm [shape: f32[1,8,128], index: 3, kind: output, shape index: {}]
  %s4 = sld [smem:[#allocation0]]
  $region37: #{tpu_custom_call.1} parent=0
    _
  %s6 = ssub.s32 1, %s4
  %s7 = scalar_select 0, %s6, %s4
  $region1: #{tpu_custom_call.1} parent=0
    #allocation2 [shape = 'u8[1048576]{0}', space=vmem, size = 0x100000, scoped, tag = 'input window, operand 0, single buffered']
    #allocation3 [shape = 's32[1]{0}', space=sflag, size = 0x4, scoped, tag = 'scoped memory for tpu_custom_call.1']
    #allocation4 [shape = 's32[1]{0}', space=sflag, size = 0x4, scoped, tag = 'scoped memory for tpu_custom_call.1']
    #allocation5 [shape = 'u8[65536]{0}', space=vmem, size = 0x10000, scoped, tag = 'input window, operand 1, single buffered']
    #allocation6 [shape = 's32[1]{0}', space=sflag, size = 0x4, scoped, tag = 'scoped memory for tpu_custom_call.1']
    #allocation7 [shape = 'u8[4096]{0}', space=vmem, size = 0x1000, scoped, tag = 'output window, operand 0, single buffered']
    %8 = vsyncpa [#allocation3], 0
    %9 = vsyncpa [#allocation6], 0
    %10 = vsyncpa [#allocation4], 0
    // Predicated region
    $region2: #{tpu_custom_call.1} parent=1 // pred_check
      _
    $region3: #{tpu_custom_call.1} parent=1 // pred_check_branch
      %12 = sbr.rel (0) target = $region5
    $region4: #{tpu_custom_call.1} parent=1 // pred_region
      %14 = vsyncadd [#allocation3], 0
      %s15 = sshll.u32 %s0, 4
      %s16 = int_to_ptr.hbm [resolvable:$true] %s15
      %s17 = sshll.u32 [#allocation2], 4
      %s18 = int_to_ptr.vmem [resolvable:$true] %s17
      %23 = dma.hbm_to_vmem [thread:$0]  %s16, 32768, %s18, [#allocation3], 128, 128, 8
    $region5: #{tpu_custom_call.1} parent=1 // pred_fallthru
      _
    // Predicated region
    $region6: #{tpu_custom_call.1} parent=1 // pred_check
      _
    $region7: #{tpu_custom_call.1} parent=1 // pred_check_branch
      %25 = sbr.rel (0) target = $region9
    $region8: #{tpu_custom_call.1} parent=1 // pred_region
      %27 = vsyncadd [#allocation6], 0
      %s28 = sshll.u32 %s1, 4
      %s29 = int_to_ptr.hbm [resolvable:$true] %s28
      %s30 = sshll.u32 [#allocation5], 4
      %s31 = int_to_ptr.vmem [resolvable:$true] %s30
      %36 = dma.hbm_to_vmem [thread:$0]  %s29, 2048, %s31, [#allocation6], 128, 128, 8
    $region9: #{tpu_custom_call.1} parent=1 // pred_fallthru
      _
    // Predicated region
    $region10: #{tpu_custom_call.1} parent=1 // pred_check
      _
    $region11: #{tpu_custom_call.1} parent=1 // pred_check_branch
      %38 = sbr.rel (0) target = $region13
    $region12: #{tpu_custom_call.1} parent=1 // pred_region
      _
    $region13: #{tpu_custom_call.1} parent=1 // pred_fallthru
      _
    // Predicated region
    $region14: #{tpu_custom_call.1} parent=1 // pred_check
      _
    $region15: #{tpu_custom_call.1} parent=1 // pred_check_branch
      %40 = sbr.rel (0) target = $region17
    $region16: #{tpu_custom_call.1} parent=1 // pred_region
      %42 = dma.done [#allocation3], 32768
    $region17: #{tpu_custom_call.1} parent=1 // pred_fallthru
      _
    // Predicated region
    $region18: #{tpu_custom_call.1} parent=1 // pred_check
      _
    $region19: #{tpu_custom_call.1} parent=1 // pred_check_branch
      %44 = sbr.rel (0) target = $region21
    $region20: #{tpu_custom_call.1} parent=1 // pred_region
      %46 = dma.done [#allocation6], 2048
    $region21: #{tpu_custom_call.1} parent=1 // pred_fallthru
      _
    %v47 = vld [vmem:[#allocation5] sm:$0xff]
    %v48 = vld [vmem:[#allocation5 + $0x8] sm:$0xff]
    %v49 = vld [vmem:[#allocation5 + $0x10] sm:$0xff]
    %v50 = vld [vmem:[#allocation5 + $0x18] sm:$0xff]
    %v51 = vld [vmem:[#allocation5 + $0x20] sm:$0xff]
    %v52 = vld [vmem:[#allocation5 + $0x28] sm:$0xff]
    %v53 = vld [vmem:[#allocation5 + $0x30] sm:$0xff]
    %v54 = vld [vmem:[#allocation5 + $0x38] sm:$0xff]
    %v55 = vld [vmem:[#allocation5 + $0x40] sm:$0xff]
    %v56 = vld [vmem:[#allocation5 + $0x48] sm:$0xff]
    %v57 = vld [vmem:[#allocation5 + $0x50] sm:$0xff]
    %v58 = vld [vmem:[#allocation5 + $0x58] sm:$0xff]
    %v59 = vld [vmem:[#allocation5 + $0x60] sm:$0xff]
    %v60 = vld [vmem:[#allocation5 + $0x68] sm:$0xff]
    %v61 = vld [vmem:[#allocation5 + $0x70] sm:$0xff]
    %v62 = vld [vmem:[#allocation5 + $0x78] sm:$0xff]
    %v63 = vpack.c.bf16 %v48, %v47
    %v64 = vpack.c.bf16 %v50, %v49
    %v65 = vpack.c.bf16 %v52, %v51
    %v66 = vpack.c.bf16 %v54, %v53
    %v67 = vpack.c.bf16 %v56, %v55
    %v68 = vpack.c.bf16 %v58, %v57
    %v69 = vpack.c.bf16 %v60, %v59
    %v70 = vpack.c.bf16 %v62, %v61
    %v71 = vld [vmem:[%s2] sm:$0x1]
    loop: start=0, step=1, limit=2
    $region22: #{tpu_custom_call.1} parent=1 // loop_pre_header
      _
    $region23: #{tpu_custom_call.1} parent=1 // loop_header
      %s73 = sphi 0, %s77
      %p74 = scmp.ge.s32.totalorder %s73, 2
      %v78 = vphi 0.0, %v861
    $region24: #{tpu_custom_call.1} parent=1 // loop_header_branch
      %76 = sbr.rel (%p74) target = $region28
    $region25: #{tpu_custom_call.1} parent=1 // loop_body
      %s79 = smul.u32 %s73, 128
      %s80 = smul.u32 %s79, 8
      %s81 = scalar_lea.vmem [#allocation2], %s80
      %v82 = vld [vmem:[%s81] sm:$0xff]
      %v83 = vld [vmem:[%s81 + $0x8] sm:$0xff]
      %v84 = vld [vmem:[%s81 + $0x10] sm:$0xff]
      %v85 = vld [vmem:[%s81 + $0x18] sm:$0xff]
      %v86 = vld [vmem:[%s81 + $0x20] sm:$0xff]
      %v87 = vld [vmem:[%s81 + $0x28] sm:$0xff]
      %v88 = vld [vmem:[%s81 + $0x30] sm:$0xff]
      %v89 = vld [vmem:[%s81 + $0x38] sm:$0xff]
      %v90 = vld [vmem:[%s81 + $0x40] sm:$0xff]
      %v91 = vld [vmem:[%s81 + $0x48] sm:$0xff]
      %v92 = vld [vmem:[%s81 + $0x50] sm:$0xff]
      %v93 = vld [vmem:[%s81 + $0x58] sm:$0xff]
      %v94 = vld [vmem:[%s81 + $0x60] sm:$0xff]
      %v95 = vld [vmem:[%s81 + $0x68] sm:$0xff]
      %v96 = vld [vmem:[%s81 + $0x70] sm:$0xff]
      %v97 = vld [vmem:[%s81 + $0x78] sm:$0xff]
      %v98 = vld [vmem:[%s81 + $0x80] sm:$0xff]
      %v99 = vld [vmem:[%s81 + $0x88] sm:$0xff]
      %v100 = vld [vmem:[%s81 + $0x90] sm:$0xff]
      %v101 = vld [vmem:[%s81 + $0x98] sm:$0xff]
      %v102 = vld [vmem:[%s81 + $0xa0] sm:$0xff]
      %v103 = vld [vmem:[%s81 + $0xa8] sm:$0xff]
      %v104 = vld [vmem:[%s81 + $0xb0] sm:$0xff]
      %v105 = vld [vmem:[%s81 + $0xb8] sm:$0xff]
      %v106 = vld [vmem:[%s81 + $0xc0] sm:$0xff]
      %v107 = vld [vmem:[%s81 + $0xc8] sm:$0xff]
      %v108 = vld [vmem:[%s81 + $0xd0] sm:$0xff]
      %v109 = vld [vmem:[%s81 + $0xd8] sm:$0xff]
      %v110 = vld [vmem:[%s81 + $0xe0] sm:$0xff]
      %v111 = vld [vmem:[%s81 + $0xe8] sm:$0xff]
      %v112 = vld [vmem:[%s81 + $0xf0] sm:$0xff]
      %v113 = vld [vmem:[%s81 + $0xf8] sm:$0xff]
      %v114 = vld [vmem:[%s81 + $0x100] sm:$0xff]
      %v115 = vld [vmem:[%s81 + $0x108] sm:$0xff]
      %v116 = vld [vmem:[%s81 + $0x110] sm:$0xff]
      %v117 = vld [vmem:[%s81 + $0x118] sm:$0xff]
      %v118 = vld [vmem:[%s81 + $0x120] sm:$0xff]
      %v119 = vld [vmem:[%s81 + $0x128] sm:$0xff]
      %v120 = vld [vmem:[%s81 + $0x130] sm:$0xff]
      %v121 = vld [vmem:[%s81 + $0x138] sm:$0xff]
      %v122 = vld [vmem:[%s81 + $0x140] sm:$0xff]
      %v123 = vld [vmem:[%s81 + $0x148] sm:$0xff]
      %v124 = vld [vmem:[%s81 + $0x150] sm:$0xff]
      %v125 = vld [vmem:[%s81 + $0x158] sm:$0xff]
      %v126 = vld [vmem:[%s81 + $0x160] sm:$0xff]
      %v127 = vld [vmem:[%s81 + $0x168] sm:$0xff]
      %v128 = vld [vmem:[%s81 + $0x170] sm:$0xff]
      %v129 = vld [vmem:[%s81 + $0x178] sm:$0xff]
      %v130 = vld [vmem:[%s81 + $0x180] sm:$0xff]
      %v131 = vld [vmem:[%s81 + $0x188] sm:$0xff]
      %v132 = vld [vmem:[%s81 + $0x190] sm:$0xff]
      %v133 = vld [vmem:[%s81 + $0x198] sm:$0xff]
      %v134 = vld [vmem:[%s81 + $0x1a0] sm:$0xff]
      %v135 = vld [vmem:[%s81 + $0x1a8] sm:$0xff]
      %v136 = vld [vmem:[%s81 + $0x1b0] sm:$0xff]
      %v137 = vld [vmem:[%s81 + $0x1b8] sm:$0xff]
      %v138 = vld [vmem:[%s81 + $0x1c0] sm:$0xff]
      %v139 = vld [vmem:[%s81 + $0x1c8] sm:$0xff]
      %v140 = vld [vmem:[%s81 + $0x1d0] sm:$0xff]
      %v141 = vld [vmem:[%s81 + $0x1d8] sm:$0xff]
      %v142 = vld [vmem:[%s81 + $0x1e0] sm:$0xff]
      %v143 = vld [vmem:[%s81 + $0x1e8] sm:$0xff]
      %v144 = vld [vmem:[%s81 + $0x1f0] sm:$0xff]
      %v145 = vld [vmem:[%s81 + $0x1f8] sm:$0xff]
      %v146 = vld [vmem:[%s81 + $0x200] sm:$0xff]
      %v147 = vld [vmem:[%s81 + $0x208] sm:$0xff]
      %v148 = vld [vmem:[%s81 + $0x210] sm:$0xff]
      %v149 = vld [vmem:[%s81 + $0x218] sm:$0xff]
      %v150 = vld [vmem:[%s81 + $0x220] sm:$0xff]
      %v151 = vld [vmem:[%s81 + $0x228] sm:$0xff]
      %v152 = vld [vmem:[%s81 + $0x230] sm:$0xff]
      %v153 = vld [vmem:[%s81 + $0x238] sm:$0xff]
      %v154 = vld [vmem:[%s81 + $0x240] sm:$0xff]
      %v155 = vld [vmem:[%s81 + $0x248] sm:$0xff]
      %v156 = vld [vmem:[%s81 + $0x250] sm:$0xff]
      %v157 = vld [vmem:[%s81 + $0x258] sm:$0xff]
      %v158 = vld [vmem:[%s81 + $0x260] sm:$0xff]
      %v159 = vld [vmem:[%s81 + $0x268] sm:$0xff]
      %v160 = vld [vmem:[%s81 + $0x270] sm:$0xff]
      %v161 = vld [vmem:[%s81 + $0x278] sm:$0xff]
      %v162 = vld [vmem:[%s81 + $0x280] sm:$0xff]
      %v163 = vld [vmem:[%s81 + $0x288] sm:$0xff]
      %v164 = vld [vmem:[%s81 + $0x290] sm:$0xff]
      %v165 = vld [vmem:[%s81 + $0x298] sm:$0xff]
      %v166 = vld [vmem:[%s81 + $0x2a0] sm:$0xff]
      %v167 = vld [vmem:[%s81 + $0x2a8] sm:$0xff]
      %v168 = vld [vmem:[%s81 + $0x2b0] sm:$0xff]
      %v169 = vld [vmem:[%s81 + $0x2b8] sm:$0xff]
      %v170 = vld [vmem:[%s81 + $0x2c0] sm:$0xff]
      %v171 = vld [vmem:[%s81 + $0x2c8] sm:$0xff]
      %v172 = vld [vmem:[%s81 + $0x2d0] sm:$0xff]
      %v173 = vld [vmem:[%s81 + $0x2d8] sm:$0xff]
      %v174 = vld [vmem:[%s81 + $0x2e0] sm:$0xff]
      %v175 = vld [vmem:[%s81 + $0x2e8] sm:$0xff]
      %v176 = vld [vmem:[%s81 + $0x2f0] sm:$0xff]
      %v177 = vld [vmem:[%s81 + $0x2f8] sm:$0xff]
      %v178 = vld [vmem:[%s81 + $0x300] sm:$0xff]
      %v179 = vld [vmem:[%s81 + $0x308] sm:$0xff]
      %v180 = vld [vmem:[%s81 + $0x310] sm:$0xff]
      %v181 = vld [vmem:[%s81 + $0x318] sm:$0xff]
      %v182 = vld [vmem:[%s81 + $0x320] sm:$0xff]
      %v183 = vld [vmem:[%s81 + $0x328] sm:$0xff]
      %v184 = vld [vmem:[%s81 + $0x330] sm:$0xff]
      %v185 = vld [vmem:[%s81 + $0x338] sm:$0xff]
      %v186 = vld [vmem:[%s81 + $0x340] sm:$0xff]
      %v187 = vld [vmem:[%s81 + $0x348] sm:$0xff]
      %v188 = vld [vmem:[%s81 + $0x350] sm:$0xff]
      %v189 = vld [vmem:[%s81 + $0x358] sm:$0xff]
      %v190 = vld [vmem:[%s81 + $0x360] sm:$0xff]
      %v191 = vld [vmem:[%s81 + $0x368] sm:$0xff]
      %v192 = vld [vmem:[%s81 + $0x370] sm:$0xff]
      %v193 = vld [vmem:[%s81 + $0x378] sm:$0xff]
      %v194 = vld [vmem:[%s81 + $0x380] sm:$0xff]
      %v195 = vld [vmem:[%s81 + $0x388] sm:$0xff]
      %v196 = vld [vmem:[%s81 + $0x390] sm:$0xff]
      %v197 = vld [vmem:[%s81 + $0x398] sm:$0xff]
      %v198 = vld [vmem:[%s81 + $0x3a0] sm:$0xff]
      %v199 = vld [vmem:[%s81 + $0x3a8] sm:$0xff]
      %v200 = vld [vmem:[%s81 + $0x3b0] sm:$0xff]
      %v201 = vld [vmem:[%s81 + $0x3b8] sm:$0xff]
      %v202 = vld [vmem:[%s81 + $0x3c0] sm:$0xff]
      %v203 = vld [vmem:[%s81 + $0x3c8] sm:$0xff]
      %v204 = vld [vmem:[%s81 + $0x3d0] sm:$0xff]
      %v205 = vld [vmem:[%s81 + $0x3d8] sm:$0xff]
      %v206 = vld [vmem:[%s81 + $0x3e0] sm:$0xff]
      %v207 = vld [vmem:[%s81 + $0x3e8] sm:$0xff]
      %v208 = vld [vmem:[%s81 + $0x3f0] sm:$0xff]
      %v209 = vld [vmem:[%s81 + $0x3f8] sm:$0xff]
      %v210 = vpack.c.bf16 %v83, %v82
      %v211 = vpack.c.bf16 %v85, %v84
      %v212 = vpack.c.bf16 %v87, %v86
      %v213 = vpack.c.bf16 %v89, %v88
      %v214 = vpack.c.bf16 %v91, %v90
      %v215 = vpack.c.bf16 %v93, %v92
      %v216 = vpack.c.bf16 %v95, %v94
      %v217 = vpack.c.bf16 %v97, %v96
      %v218 = vpack.c.bf16 %v99, %v98
      %v219 = vpack.c.bf16 %v101, %v100
      %v220 = vpack.c.bf16 %v103, %v102
      %v221 = vpack.c.bf16 %v105, %v104
      %v222 = vpack.c.bf16 %v107, %v106
      %v223 = vpack.c.bf16 %v109, %v108
      %v224 = vpack.c.bf16 %v111, %v110
      %v225 = vpack.c.bf16 %v113, %v112
      %v226 = vpack.c.bf16 %v115, %v114
      %v227 = vpack.c.bf16 %v117, %v116
      %v228 = vpack.c.bf16 %v119, %v118
      %v229 = vpack.c.bf16 %v121, %v120
      %v230 = vpack.c.bf16 %v123, %v122
      %v231 = vpack.c.bf16 %v125, %v124
      %v232 = vpack.c.bf16 %v127, %v126
      %v233 = vpack.c.bf16 %v129, %v128
      %v234 = vpack.c.bf16 %v131, %v130
      %v235 = vpack.c.bf16 %v133, %v132
      %v236 = vpack.c.bf16 %v135, %v134
      %v237 = vpack.c.bf16 %v137, %v136
      %v238 = vpack.c.bf16 %v139, %v138
      %v239 = vpack.c.bf16 %v141, %v140
      %v240 = vpack.c.bf16 %v143, %v142
      %v241 = vpack.c.bf16 %v145, %v144
      %v242 = vpack.c.bf16 %v147, %v146
      %v243 = vpack.c.bf16 %v149, %v148
      %v244 = vpack.c.bf16 %v151, %v150
      %v245 = vpack.c.bf16 %v153, %v152
      %v246 = vpack.c.bf16 %v155, %v154
      %v247 = vpack.c.bf16 %v157, %v156
      %v248 = vpack.c.bf16 %v159, %v158
      %v249 = vpack.c.bf16 %v161, %v160
      %v250 = vpack.c.bf16 %v163, %v162
      %v251 = vpack.c.bf16 %v165, %v164
      %v252 = vpack.c.bf16 %v167, %v166
      %v253 = vpack.c.bf16 %v169, %v168
      %v254 = vpack.c.bf16 %v171, %v170
      %v255 = vpack.c.bf16 %v173, %v172
      %v256 = vpack.c.bf16 %v175, %v174
      %v257 = vpack.c.bf16 %v177, %v176
      %v258 = vpack.c.bf16 %v179, %v178
      %v259 = vpack.c.bf16 %v181, %v180
      %v260 = vpack.c.bf16 %v183, %v182
      %v261 = vpack.c.bf16 %v185, %v184
      %v262 = vpack.c.bf16 %v187, %v186
      %v263 = vpack.c.bf16 %v189, %v188
      %v264 = vpack.c.bf16 %v191, %v190
      %v265 = vpack.c.bf16 %v193, %v192
      %v266 = vpack.c.bf16 %v195, %v194
      %v267 = vpack.c.bf16 %v197, %v196
      %v268 = vpack.c.bf16 %v199, %v198
      %v269 = vpack.c.bf16 %v201, %v200
      %v270 = vpack.c.bf16 %v203, %v202
      %v271 = vpack.c.bf16 %v205, %v204
      %v272 = vpack.c.bf16 %v207, %v206
      %v273 = vpack.c.bf16 %v209, %v208
      %v275 = vperm.slane %v71, 0
      %277 = vmatpush.bf16.msra.mxu0 %v70
      %278 = vmatpush.bf16.msra.mxu0 %v69
      %279 = vmatpush.bf16.msra.mxu0 %v68
      %280 = vmatpush.bf16.msra.mxu0 %v67
      %281 = vmatpush.bf16.msra.mxu0 %v66
      %282 = vmatpush.bf16.msra.mxu0 %v65
      %283 = vmatpush.bf16.msra.mxu0 %v64
      %284 = vmatpush.bf16.msra.mxu0 %v63
      %285 = vmatmul.bf16.gmra.mxu0 %v210
      %v286 = vpop.f32.mrf.mxu0
      %v287 = vadd.f32 %v275, %v286
      %v288 = vpop.f32.mrf.mxu0
      %v289 = vadd.f32 %v275, %v288
      %290 = vmatmul.bf16.gmra.mxu0 %v211
      %v291 = vpop.f32.mrf.mxu0
      %v292 = vadd.f32 %v275, %v291
      %v293 = vpop.f32.mrf.mxu0
      %v294 = vadd.f32 %v275, %v293
      %295 = vmatmul.bf16.gmra.mxu0 %v212
      %v296 = vpop.f32.mrf.mxu0
      %v297 = vadd.f32 %v275, %v296
      %v298 = vpop.f32.mrf.mxu0
      %v299 = vadd.f32 %v275, %v298
      %300 = vmatmul.bf16.gmra.mxu0 %v213
      %v301 = vpop.f32.mrf.mxu0
      %v302 = vadd.f32 %v275, %v301
      %v303 = vpop.f32.mrf.mxu0
      %v304 = vadd.f32 %v275, %v303
      %305 = vmatmul.bf16.gmra.mxu0 %v214
      %v306 = vpop.f32.mrf.mxu0
      %v307 = vadd.f32 %v275, %v306
      %v308 = vpop.f32.mrf.mxu0
      %v309 = vadd.f32 %v275, %v308
      %310 = vmatmul.bf16.gmra.mxu0 %v215
      %v311 = vpop.f32.mrf.mxu0
      %v312 = vadd.f32 %v275, %v311
      %v313 = vpop.f32.mrf.mxu0
      %v314 = vadd.f32 %v275, %v313
      %315 = vmatmul.bf16.gmra.mxu0 %v216
      %v316 = vpop.f32.mrf.mxu0
      %v317 = vadd.f32 %v275, %v316
      %v318 = vpop.f32.mrf.mxu0
      %v319 = vadd.f32 %v275, %v318
      %320 = vmatmul.bf16.gmra.mxu0 %v217
      %v321 = vpop.f32.mrf.mxu0
      %v322 = vadd.f32 %v275, %v321
      %v323 = vpop.f32.mrf.mxu0
      %v324 = vadd.f32 %v275, %v323
      %325 = vmatmul.bf16.gmra.mxu0 %v218
      %v326 = vpop.f32.mrf.mxu0
      %v327 = vadd.f32 %v275, %v326
      %v328 = vpop.f32.mrf.mxu0
      %v329 = vadd.f32 %v275, %v328
      %330 = vmatmul.bf16.gmra.mxu0 %v219
      %v331 = vpop.f32.mrf.mxu0
      %v332 = vadd.f32 %v275, %v331
      %v333 = vpop.f32.mrf.mxu0
      %v334 = vadd.f32 %v275, %v333
      %335 = vmatmul.bf16.gmra.mxu0 %v220
      %v336 = vpop.f32.mrf.mxu0
      %v337 = vadd.f32 %v275, %v336
      %v338 = vpop.f32.mrf.mxu0
      %v339 = vadd.f32 %v275, %v338
      %340 = vmatmul.bf16.gmra.mxu0 %v221
      %v341 = vpop.f32.mrf.mxu0
      %v342 = vadd.f32 %v275, %v341
      %v343 = vpop.f32.mrf.mxu0
      %v344 = vadd.f32 %v275, %v343
      %345 = vmatmul.bf16.gmra.mxu0 %v222
      %v346 = vpop.f32.mrf.mxu0
      %v347 = vadd.f32 %v275, %v346
      %v348 = vpop.f32.mrf.mxu0
      %v349 = vadd.f32 %v275, %v348
      %350 = vmatmul.bf16.gmra.mxu0 %v223
      %v351 = vpop.f32.mrf.mxu0
      %v352 = vadd.f32 %v275, %v351
      %v353 = vpop.f32.mrf.mxu0
      %v354 = vadd.f32 %v275, %v353
      %355 = vmatmul.bf16.gmra.mxu0 %v224
      %v356 = vpop.f32.mrf.mxu0
      %v357 = vadd.f32 %v275, %v356
      %v358 = vpop.f32.mrf.mxu0
      %v359 = vadd.f32 %v275, %v358
      %360 = vmatmul.bf16.gmra.mxu0 %v225
      %v361 = vpop.f32.mrf.mxu0
      %v362 = vadd.f32 %v275, %v361
      %v363 = vpop.f32.mrf.mxu0
      %v364 = vadd.f32 %v275, %v363
      %365 = vmatmul.bf16.gmra.mxu0 %v226
      %v366 = vpop.f32.mrf.mxu0
      %v367 = vadd.f32 %v275, %v366
      %v368 = vpop.f32.mrf.mxu0
      %v369 = vadd.f32 %v275, %v368
      %370 = vmatmul.bf16.gmra.mxu0 %v227
      %v371 = vpop.f32.mrf.mxu0
      %v372 = vadd.f32 %v275, %v371
      %v373 = vpop.f32.mrf.mxu0
      %v374 = vadd.f32 %v275, %v373
      %375 = vmatmul.bf16.gmra.mxu0 %v228
      %v376 = vpop.f32.mrf.mxu0
      %v377 = vadd.f32 %v275, %v376
      %v378 = vpop.f32.mrf.mxu0
      %v379 = vadd.f32 %v275, %v378
      %380 = vmatmul.bf16.gmra.mxu0 %v229
      %v381 = vpop.f32.mrf.mxu0
      %v382 = vadd.f32 %v275, %v381
      %v383 = vpop.f32.mrf.mxu0
      %v384 = vadd.f32 %v275, %v383
      %385 = vmatmul.bf16.gmra.mxu0 %v230
      %v386 = vpop.f32.mrf.mxu0
      %v387 = vadd.f32 %v275, %v386
      %v388 = vpop.f32.mrf.mxu0
      %v389 = vadd.f32 %v275, %v388
      %390 = vmatmul.bf16.gmra.mxu0 %v231
      %v391 = vpop.f32.mrf.mxu0
      %v392 = vadd.f32 %v275, %v391
      %v393 = vpop.f32.mrf.mxu0
      %v394 = vadd.f32 %v275, %v393
      %395 = vmatmul.bf16.gmra.mxu0 %v232
      %v396 = vpop.f32.mrf.mxu0
      %v397 = vadd.f32 %v275, %v396
      %v398 = vpop.f32.mrf.mxu0
      %v399 = vadd.f32 %v275, %v398
      %400 = vmatmul.bf16.gmra.mxu0 %v233
      %v401 = vpop.f32.mrf.mxu0
      %v402 = vadd.f32 %v275, %v401
      %v403 = vpop.f32.mrf.mxu0
      %v404 = vadd.f32 %v275, %v403
      %405 = vmatmul.bf16.gmra.mxu0 %v234
      %v406 = vpop.f32.mrf.mxu0
      %v407 = vadd.f32 %v275, %v406
      %v408 = vpop.f32.mrf.mxu0
      %v409 = vadd.f32 %v275, %v408
      %410 = vmatmul.bf16.gmra.mxu0 %v235
      %v411 = vpop.f32.mrf.mxu0
      %v412 = vadd.f32 %v275, %v411
      %v413 = vpop.f32.mrf.mxu0
      %v414 = vadd.f32 %v275, %v413
      %415 = vmatmul.bf16.gmra.mxu0 %v236
      %v416 = vpop.f32.mrf.mxu0
      %v417 = vadd.f32 %v275, %v416
      %v418 = vpop.f32.mrf.mxu0
      %v419 = vadd.f32 %v275, %v418
      %420 = vmatmul.bf16.gmra.mxu0 %v237
      %v421 = vpop.f32.mrf.mxu0
      %v422 = vadd.f32 %v275, %v421
      %v423 = vpop.f32.mrf.mxu0
      %v424 = vadd.f32 %v275, %v423
      %425 = vmatmul.bf16.gmra.mxu0 %v238
      %v426 = vpop.f32.mrf.mxu0
      %v427 = vadd.f32 %v275, %v426
      %v428 = vpop.f32.mrf.mxu0
      %v429 = vadd.f32 %v275, %v428
      %430 = vmatmul.bf16.gmra.mxu0 %v239
      %v431 = vpop.f32.mrf.mxu0
      %v432 = vadd.f32 %v275, %v431
      %v433 = vpop.f32.mrf.mxu0
      %v434 = vadd.f32 %v275, %v433
      %435 = vmatmul.bf16.gmra.mxu0 %v240
      %v436 = vpop.f32.mrf.mxu0
      %v437 = vadd.f32 %v275, %v436
      %v438 = vpop.f32.mrf.mxu0
      %v439 = vadd.f32 %v275, %v438
      %440 = vmatmul.bf16.gmra.mxu0 %v241
      %v441 = vpop.f32.mrf.mxu0
      %v442 = vadd.f32 %v275, %v441
      %v443 = vpop.f32.mrf.mxu0
      %v444 = vadd.f32 %v275, %v443
      %445 = vmatmul.bf16.gmra.mxu0 %v242
      %v446 = vpop.f32.mrf.mxu0
      %v447 = vadd.f32 %v275, %v446
      %v448 = vpop.f32.mrf.mxu0
      %v449 = vadd.f32 %v275, %v448
      %450 = vmatmul.bf16.gmra.mxu0 %v243
      %v451 = vpop.f32.mrf.mxu0
      %v452 = vadd.f32 %v275, %v451
      %v453 = vpop.f32.mrf.mxu0
      %v454 = vadd.f32 %v275, %v453
      %455 = vmatmul.bf16.gmra.mxu0 %v244
      %v456 = vpop.f32.mrf.mxu0
      %v457 = vadd.f32 %v275, %v456
      %v458 = vpop.f32.mrf.mxu0
      %v459 = vadd.f32 %v275, %v458
      %460 = vmatmul.bf16.gmra.mxu0 %v245
      %v461 = vpop.f32.mrf.mxu0
      %v462 = vadd.f32 %v275, %v461
      %v463 = vpop.f32.mrf.mxu0
      %v464 = vadd.f32 %v275, %v463
      %465 = vmatmul.bf16.gmra.mxu0 %v246
      %v466 = vpop.f32.mrf.mxu0
      %v467 = vadd.f32 %v275, %v466
      %v468 = vpop.f32.mrf.mxu0
      %v469 = vadd.f32 %v275, %v468
      %470 = vmatmul.bf16.gmra.mxu0 %v247
      %v471 = vpop.f32.mrf.mxu0
      %v472 = vadd.f32 %v275, %v471
      %v473 = vpop.f32.mrf.mxu0
      %v474 = vadd.f32 %v275, %v473
      %475 = vmatmul.bf16.gmra.mxu0 %v248
      %v476 = vpop.f32.mrf.mxu0
      %v477 = vadd.f32 %v275, %v476
      %v478 = vpop.f32.mrf.mxu0
      %v479 = vadd.f32 %v275, %v478
      %480 = vmatmul.bf16.gmra.mxu0 %v249
      %v481 = vpop.f32.mrf.mxu0
      %v482 = vadd.f32 %v275, %v481
      %v483 = vpop.f32.mrf.mxu0
      %v484 = vadd.f32 %v275, %v483
      %485 = vmatmul.bf16.gmra.mxu0 %v250
      %v486 = vpop.f32.mrf.mxu0
      %v487 = vadd.f32 %v275, %v486
      %v488 = vpop.f32.mrf.mxu0
      %v489 = vadd.f32 %v275, %v488
      %490 = vmatmul.bf16.gmra.mxu0 %v251
      %v491 = vpop.f32.mrf.mxu0
      %v492 = vadd.f32 %v275, %v491
      %v493 = vpop.f32.mrf.mxu0
      %v494 = vadd.f32 %v275, %v493
      %495 = vmatmul.bf16.gmra.mxu0 %v252
      %v496 = vpop.f32.mrf.mxu0
      %v497 = vadd.f32 %v275, %v496
      %v498 = vpop.f32.mrf.mxu0
      %v499 = vadd.f32 %v275, %v498
      %500 = vmatmul.bf16.gmra.mxu0 %v253
      %v501 = vpop.f32.mrf.mxu0
      %v502 = vadd.f32 %v275, %v501
      %v503 = vpop.f32.mrf.mxu0
      %v504 = vadd.f32 %v275, %v503
      %505 = vmatmul.bf16.gmra.mxu0 %v254
      %v506 = vpop.f32.mrf.mxu0
      %v507 = vadd.f32 %v275, %v506
      %v508 = vpop.f32.mrf.mxu0
      %v509 = vadd.f32 %v275, %v508
      %510 = vmatmul.bf16.gmra.mxu0 %v255
      %v511 = vpop.f32.mrf.mxu0
      %v512 = vadd.f32 %v275, %v511
      %v513 = vpop.f32.mrf.mxu0
      %v514 = vadd.f32 %v275, %v513
      %515 = vmatmul.bf16.gmra.mxu0 %v256
      %v516 = vpop.f32.mrf.mxu0
      %v517 = vadd.f32 %v275, %v516
      %v518 = vpop.f32.mrf.mxu0
      %v519 = vadd.f32 %v275, %v518
      %520 = vmatmul.bf16.gmra.mxu0 %v257
      %v521 = vpop.f32.mrf.mxu0
      %v522 = vadd.f32 %v275, %v521
      %v523 = vpop.f32.mrf.mxu0
      %v524 = vadd.f32 %v275, %v523
      %525 = vmatmul.bf16.gmra.mxu0 %v258
      %v526 = vpop.f32.mrf.mxu0
      %v527 = vadd.f32 %v275, %v526
      %v528 = vpop.f32.mrf.mxu0
      %v529 = vadd.f32 %v275, %v528
      %530 = vmatmul.bf16.gmra.mxu0 %v259
      %v531 = vpop.f32.mrf.mxu0
      %v532 = vadd.f32 %v275, %v531
      %v533 = vpop.f32.mrf.mxu0
      %v534 = vadd.f32 %v275, %v533
      %535 = vmatmul.bf16.gmra.mxu0 %v260
      %v536 = vpop.f32.mrf.mxu0
      %v537 = vadd.f32 %v275, %v536
      %v538 = vpop.f32.mrf.mxu0
      %v539 = vadd.f32 %v275, %v538
      %540 = vmatmul.bf16.gmra.mxu0 %v261
      %v541 = vpop.f32.mrf.mxu0
      %v542 = vadd.f32 %v275, %v541
      %v543 = vpop.f32.mrf.mxu0
      %v544 = vadd.f32 %v275, %v543
      %545 = vmatmul.bf16.gmra.mxu0 %v262
      %v546 = vpop.f32.mrf.mxu0
      %v547 = vadd.f32 %v275, %v546
      %v548 = vpop.f32.mrf.mxu0
      %v549 = vadd.f32 %v275, %v548
      %550 = vmatmul.bf16.gmra.mxu0 %v263
      %v551 = vpop.f32.mrf.mxu0
      %v552 = vadd.f32 %v275, %v551
      %v553 = vpop.f32.mrf.mxu0
      %v554 = vadd.f32 %v275, %v553
      %555 = vmatmul.bf16.gmra.mxu0 %v264
      %v556 = vpop.f32.mrf.mxu0
      %v557 = vadd.f32 %v275, %v556
      %v558 = vpop.f32.mrf.mxu0
      %v559 = vadd.f32 %v275, %v558
      %560 = vmatmul.bf16.gmra.mxu0 %v265
      %v561 = vpop.f32.mrf.mxu0
      %v562 = vadd.f32 %v275, %v561
      %v563 = vpop.f32.mrf.mxu0
      %v564 = vadd.f32 %v275, %v563
      %565 = vmatmul.bf16.gmra.mxu0 %v266
      %v566 = vpop.f32.mrf.mxu0
      %v567 = vadd.f32 %v275, %v566
      %v568 = vpop.f32.mrf.mxu0
      %v569 = vadd.f32 %v275, %v568
      %570 = vmatmul.bf16.gmra.mxu0 %v267
      %v571 = vpop.f32.mrf.mxu0
      %v572 = vadd.f32 %v275, %v571
      %v573 = vpop.f32.mrf.mxu0
      %v574 = vadd.f32 %v275, %v573
      %575 = vmatmul.bf16.gmra.mxu0 %v268
      %v576 = vpop.f32.mrf.mxu0
      %v577 = vadd.f32 %v275, %v576
      %v578 = vpop.f32.mrf.mxu0
      %v579 = vadd.f32 %v275, %v578
      %580 = vmatmul.bf16.gmra.mxu0 %v269
      %v581 = vpop.f32.mrf.mxu0
      %v582 = vadd.f32 %v275, %v581
      %v583 = vpop.f32.mrf.mxu0
      %v584 = vadd.f32 %v275, %v583
      %585 = vmatmul.bf16.gmra.mxu0 %v270
      %v586 = vpop.f32.mrf.mxu0
      %v587 = vadd.f32 %v275, %v586
      %v588 = vpop.f32.mrf.mxu0
      %v589 = vadd.f32 %v275, %v588
      %590 = vmatmul.bf16.gmra.mxu0 %v271
      %v591 = vpop.f32.mrf.mxu0
      %v592 = vadd.f32 %v275, %v591
      %v593 = vpop.f32.mrf.mxu0
      %v594 = vadd.f32 %v275, %v593
      %595 = vmatmul.bf16.gmra.mxu0 %v272
      %v596 = vpop.f32.mrf.mxu0
      %v597 = vadd.f32 %v275, %v596
      %v598 = vpop.f32.mrf.mxu0
      %v599 = vadd.f32 %v275, %v598
      %600 = vmatmul.bf16.gmra.mxu0 %v273
      %v601 = vpop.f32.mrf.mxu0
      %v602 = vadd.f32 %v275, %v601
      %v603 = vpop.f32.mrf.mxu0
      %v604 = vadd.f32 %v275, %v603
      %605 = vdwg.mxu0
      %v606 = vtanh.pop %v287
      %v607 = vtanh.pop %v289
      %v608 = vtanh.pop %v292
      %v609 = vtanh.pop %v294
      %v610 = vtanh.pop %v297
      %v611 = vtanh.pop %v299
      %v612 = vtanh.pop %v302
      %v613 = vtanh.pop %v304
      %v614 = vtanh.pop %v307
      %v615 = vtanh.pop %v309
      %v616 = vtanh.pop %v312
      %v617 = vtanh.pop %v314
      %v618 = vtanh.pop %v317
      %v619 = vtanh.pop %v319
      %v620 = vtanh.pop %v322
      %v621 = vtanh.pop %v324
      %v622 = vtanh.pop %v327
      %v623 = vtanh.pop %v329
      %v624 = vtanh.pop %v332
      %v625 = vtanh.pop %v334
      %v626 = vtanh.pop %v337
      %v627 = vtanh.pop %v339
      %v628 = vtanh.pop %v342
      %v629 = vtanh.pop %v344
      %v630 = vtanh.pop %v347
      %v631 = vtanh.pop %v349
      %v632 = vtanh.pop %v352
      %v633 = vtanh.pop %v354
      %v634 = vtanh.pop %v357
      %v635 = vtanh.pop %v359
      %v636 = vtanh.pop %v362
      %v637 = vtanh.pop %v364
      %v638 = vtanh.pop %v367
      %v639 = vtanh.pop %v369
      %v640 = vtanh.pop %v372
      %v641 = vtanh.pop %v374
      %v642 = vtanh.pop %v377
      %v643 = vtanh.pop %v379
      %v644 = vtanh.pop %v382
      %v645 = vtanh.pop %v384
      %v646 = vtanh.pop %v387
      %v647 = vtanh.pop %v389
      %v648 = vtanh.pop %v392
      %v649 = vtanh.pop %v394
      %v650 = vtanh.pop %v397
      %v651 = vtanh.pop %v399
      %v652 = vtanh.pop %v402
      %v653 = vtanh.pop %v404
      %v654 = vtanh.pop %v407
      %v655 = vtanh.pop %v409
      %v656 = vtanh.pop %v412
      %v657 = vtanh.pop %v414
      %v658 = vtanh.pop %v417
      %v659 = vtanh.pop %v419
      %v660 = vtanh.pop %v422
      %v661 = vtanh.pop %v424
      %v662 = vtanh.pop %v427
      %v663 = vtanh.pop %v429
      %v664 = vtanh.pop %v432
      %v665 = vtanh.pop %v434
      %v666 = vtanh.pop %v437
      %v667 = vtanh.pop %v439
      %v668 = vtanh.pop %v442
      %v669 = vtanh.pop %v444
      %v670 = vtanh.pop %v447
      %v671 = vtanh.pop %v449
      %v672 = vtanh.pop %v452
      %v673 = vtanh.pop %v454
      %v674 = vtanh.pop %v457
      %v675 = vtanh.pop %v459
      %v676 = vtanh.pop %v462
      %v677 = vtanh.pop %v464
      %v678 = vtanh.pop %v467
      %v679 = vtanh.pop %v469
      %v680 = vtanh.pop %v472
      %v681 = vtanh.pop %v474
      %v682 = vtanh.pop %v477
      %v683 = vtanh.pop %v479
      %v684 = vtanh.pop %v482
      %v685 = vtanh.pop %v484
      %v686 = vtanh.pop %v487
      %v687 = vtanh.pop %v489
      %v688 = vtanh.pop %v492
      %v689 = vtanh.pop %v494
      %v690 = vtanh.pop %v497
      %v691 = vtanh.pop %v499
      %v692 = vtanh.pop %v502
      %v693 = vtanh.pop %v504
      %v694 = vtanh.pop %v507
      %v695 = vtanh.pop %v509
      %v696 = vtanh.pop %v512
      %v697 = vtanh.pop %v514
      %v698 = vtanh.pop %v517
      %v699 = vtanh.pop %v519
      %v700 = vtanh.pop %v522
      %v701 = vtanh.pop %v524
      %v702 = vtanh.pop %v527
      %v703 = vtanh.pop %v529
      %v704 = vtanh.pop %v532
      %v705 = vtanh.pop %v534
      %v706 = vtanh.pop %v537
      %v707 = vtanh.pop %v539
      %v708 = vtanh.pop %v542
      %v709 = vtanh.pop %v544
      %v710 = vtanh.pop %v547
      %v711 = vtanh.pop %v549
      %v712 = vtanh.pop %v552
      %v713 = vtanh.pop %v554
      %v714 = vtanh.pop %v557
      %v715 = vtanh.pop %v559
      %v716 = vtanh.pop %v562
      %v717 = vtanh.pop %v564
      %v718 = vtanh.pop %v567
      %v719 = vtanh.pop %v569
      %v720 = vtanh.pop %v572
      %v721 = vtanh.pop %v574
      %v722 = vtanh.pop %v577
      %v723 = vtanh.pop %v579
      %v724 = vtanh.pop %v582
      %v725 = vtanh.pop %v584
      %v726 = vtanh.pop %v587
      %v727 = vtanh.pop %v589
      %v728 = vtanh.pop %v592
      %v729 = vtanh.pop %v594
      %v730 = vtanh.pop %v597
      %v731 = vtanh.pop %v599
      %v732 = vtanh.pop %v602
      %v733 = vtanh.pop %v604
      %v734 = vadd.f32 %v606, %v607
      %v735 = vadd.f32 %v734, %v608
      %v736 = vadd.f32 %v735, %v609
      %v737 = vadd.f32 %v736, %v610
      %v738 = vadd.f32 %v737, %v611
      %v739 = vadd.f32 %v738, %v612
      %v740 = vadd.f32 %v739, %v613
      %v741 = vadd.f32 %v740, %v614
      %v742 = vadd.f32 %v741, %v615
      %v743 = vadd.f32 %v742, %v616
      %v744 = vadd.f32 %v743, %v617
      %v745 = vadd.f32 %v744, %v618
      %v746 = vadd.f32 %v745, %v619
      %v747 = vadd.f32 %v746, %v620
      %v748 = vadd.f32 %v747, %v621
      %v749 = vadd.f32 %v748, %v622
      %v750 = vadd.f32 %v749, %v623
      %v751 = vadd.f32 %v750, %v624
      %v752 = vadd.f32 %v751, %v625
      %v753 = vadd.f32 %v752, %v626
      %v754 = vadd.f32 %v753, %v627
      %v755 = vadd.f32 %v754, %v628
      %v756 = vadd.f32 %v755, %v629
      %v757 = vadd.f32 %v756, %v630
      %v758 = vadd.f32 %v757, %v631
      %v759 = vadd.f32 %v758, %v632
      %v760 = vadd.f32 %v759, %v633
      %v761 = vadd.f32 %v760, %v634
      %v762 = vadd.f32 %v761, %v635
      %v763 = vadd.f32 %v762, %v636
      %v764 = vadd.f32 %v763, %v637
      %v765 = vadd.f32 %v764, %v638
      %v766 = vadd.f32 %v765, %v639
      %v767 = vadd.f32 %v766, %v640
      %v768 = vadd.f32 %v767, %v641
      %v769 = vadd.f32 %v768, %v642
      %v770 = vadd.f32 %v769, %v643
      %v771 = vadd.f32 %v770, %v644
      %v772 = vadd.f32 %v771, %v645
      %v773 = vadd.f32 %v772, %v646
      %v774 = vadd.f32 %v773, %v647
      %v775 = vadd.f32 %v774, %v648
      %v776 = vadd.f32 %v775, %v649
      %v777 = vadd.f32 %v776, %v650
      %v778 = vadd.f32 %v777, %v651
      %v779 = vadd.f32 %v778, %v652
      %v780 = vadd.f32 %v779, %v653
      %v781 = vadd.f32 %v780, %v654
      %v782 = vadd.f32 %v781, %v655
      %v783 = vadd.f32 %v782, %v656
      %v784 = vadd.f32 %v783, %v657
      %v785 = vadd.f32 %v784, %v658
      %v786 = vadd.f32 %v785, %v659
      %v787 = vadd.f32 %v786, %v660
      %v788 = vadd.f32 %v787, %v661
      %v789 = vadd.f32 %v788, %v662
      %v790 = vadd.f32 %v789, %v663
      %v791 = vadd.f32 %v790, %v664
      %v792 = vadd.f32 %v791, %v665
      %v793 = vadd.f32 %v792, %v666
      %v794 = vadd.f32 %v793, %v667
      %v795 = vadd.f32 %v794, %v668
      %v796 = vadd.f32 %v795, %v669
      %v797 = vadd.f32 %v796, %v670
      %v798 = vadd.f32 %v797, %v671
      %v799 = vadd.f32 %v798, %v672
      %v800 = vadd.f32 %v799, %v673
      %v801 = vadd.f32 %v800, %v674
      %v802 = vadd.f32 %v801, %v675
      %v803 = vadd.f32 %v802, %v676
      %v804 = vadd.f32 %v803, %v677
      %v805 = vadd.f32 %v804, %v678
      %v806 = vadd.f32 %v805, %v679
      %v807 = vadd.f32 %v806, %v680
      %v808 = vadd.f32 %v807, %v681
      %v809 = vadd.f32 %v808, %v682
      %v810 = vadd.f32 %v809, %v683
      %v811 = vadd.f32 %v810, %v684
      %v812 = vadd.f32 %v811, %v685
      %v813 = vadd.f32 %v812, %v686
      %v814 = vadd.f32 %v813, %v687
      %v815 = vadd.f32 %v814, %v688
      %v816 = vadd.f32 %v815, %v689
      %v817 = vadd.f32 %v816, %v690
      %v818 = vadd.f32 %v817, %v691
      %v819 = vadd.f32 %v818, %v692
      %v820 = vadd.f32 %v819, %v693
      %v821 = vadd.f32 %v820, %v694
      %v822 = vadd.f32 %v821, %v695
      %v823 = vadd.f32 %v822, %v696
      %v824 = vadd.f32 %v823, %v697
      %v825 = vadd.f32 %v824, %v698
      %v826 = vadd.f32 %v825, %v699
      %v827 = vadd.f32 %v826, %v700
      %v828 = vadd.f32 %v827, %v701
      %v829 = vadd.f32 %v828, %v702
      %v830 = vadd.f32 %v829, %v703
      %v831 = vadd.f32 %v830, %v704
      %v832 = vadd.f32 %v831, %v705
      %v833 = vadd.f32 %v832, %v706
      %v834 = vadd.f32 %v833, %v707
      %v835 = vadd.f32 %v834, %v708
      %v836 = vadd.f32 %v835, %v709
      %v837 = vadd.f32 %v836, %v710
      %v838 = vadd.f32 %v837, %v711
      %v839 = vadd.f32 %v838, %v712
      %v840 = vadd.f32 %v839, %v713
      %v841 = vadd.f32 %v840, %v714
      %v842 = vadd.f32 %v841, %v715
      %v843 = vadd.f32 %v842, %v716
      %v844 = vadd.f32 %v843, %v717
      %v845 = vadd.f32 %v844, %v718
      %v846 = vadd.f32 %v845, %v719
      %v847 = vadd.f32 %v846, %v720
      %v848 = vadd.f32 %v847, %v721
      %v849 = vadd.f32 %v848, %v722
      %v850 = vadd.f32 %v849, %v723
      %v851 = vadd.f32 %v850, %v724
      %v852 = vadd.f32 %v851, %v725
      %v853 = vadd.f32 %v852, %v726
      %v854 = vadd.f32 %v853, %v727
      %v855 = vadd.f32 %v854, %v728
      %v856 = vadd.f32 %v855, %v729
      %v857 = vadd.f32 %v856, %v730
      %v858 = vadd.f32 %v857, %v731
      %v859 = vadd.f32 %v858, %v732
      %v860 = vadd.f32 %v859, %v733
      %v861 = vadd.f32 %v78, %v860
    $region26: #{tpu_custom_call.1} parent=1 // loop_footer
      %s77 = sadd.s32 1, %s73
    $region27: #{tpu_custom_call.1} parent=1 // loop_footer_branch
      %72 = sbr.rel target = $region23
    $region28: #{tpu_custom_call.1} parent=1 // loop_exit
      _
    %862 = vst [vmem:[#allocation7] sm:$0xff] %v78
    // Predicated region
    $region29: #{tpu_custom_call.1} parent=1 // pred_check
      _
    $region30: #{tpu_custom_call.1} parent=1 // pred_check_branch
      %864 = sbr.rel (0) target = $region32
    $region31: #{tpu_custom_call.1} parent=1 // pred_region
      %866 = vsyncadd [#allocation4], 0
      %s868 = sshll.u32 [#allocation7], 4
      %s869 = int_to_ptr.vmem [resolvable:$true] %s868
      %s870 = sshll.u32 %s3, 4
      %s871 = int_to_ptr.hbm [resolvable:$true] %s870
      %873 = dma.vmem_to_hbm [thread:$0]  %s869, 128, %s871, [#allocation4]
    $region32: #{tpu_custom_call.1} parent=1 // pred_fallthru
      _
    // Predicated region
    $region33: #{tpu_custom_call.1} parent=1 // pred_check
      _
    $region34: #{tpu_custom_call.1} parent=1 // pred_check_branch
      %875 = sbr.rel (0) target = $region36
    $region35: #{tpu_custom_call.1} parent=1 // pred_region
      %877 = dma.done [#allocation4], 128
    $region36: #{tpu_custom_call.1} parent=1 // pred_fallthru
      _
    %878 = vsyncpa [#allocation3], 1
    %879 = vsyncpa [#allocation6], 1
    %880 = vsyncpa [#allocation4], 1

</llo_original>
